<compile_context>
chip_gen: v6e
topology: v6e:2x2x1
jax: 0.10.0
libtpu: 0.0.40
codegen_flags: <defaults>
</compile_context>

<pallas_src>
import functools

import jax
import jax.numpy as jnp
import numpy as np
from jax import lax
from jax.experimental import pallas as pl
from jax.experimental.pallas import tpu as pltpu


def _round_up(n, m=128):
    return ((n + m - 1) // m) * m


def ffnn_kernel(n_real_classes, ids_ref, emb_ref, w1_ref, b1_ref, w2_ref,
                b2_ref, out_ref):
    # ids_ref : VMEM (L, B) int32   -- token ids, batch along lanes
    # emb_ref : VMEM (VP, EP) f32   -- zero-padded embedding table (resident)
    # w1_ref  : (EP, HP)  b1_ref: (1, HP)
    # w2_ref  : (HP, CP)  b2_ref: (1, CP)
    # out_ref : (L, CP)
    L, B = ids_ref.shape
    VP = emb_ref.shape[0]

    ids = ids_ref[...]                                           # (L, B)
    vocab_iota = lax.broadcasted_iota(jnp.int32, (L, VP), 1)     # (L, VP)

    # counts[l, v] = number of batch elements whose token at position l is v.
    # B is tiny & static -> unrolled; each step is one vreg compare + add.
    # OOB ids (>= VP) simply never match -> contribute zero (safe).
    counts = jnp.zeros((L, VP), jnp.float32)
    for b in range(B):
        counts = counts + (vocab_iota == ids[:, b:b + 1]).astype(jnp.float32)

    # Fused embedding gather + batch-sum on the MXU:
    #   x[l, :] = sum_v counts[l, v] * emb[v, :]  ==  sum_b emb[ids[b, l], :]
    x = jnp.dot(counts, emb_ref[...], preferred_element_type=jnp.float32)

    # l1 + ReLU (padded hidden lanes: relu(0 + 0) = 0)
    h = jnp.dot(x, w1_ref[...], preferred_element_type=jnp.float32) + b1_ref[...]
    h = jnp.maximum(h, 0.0)                                      # (L, HP)

    # l2 + ReLU (padded class lanes stay 0)
    y = jnp.dot(h, w2_ref[...], preferred_element_type=jnp.float32) + b2_ref[...]
    y = jnp.maximum(y, 0.0)                                      # (L, CP)

    # Mask padded class lanes with a large negative BEFORE the softmax
    # reductions so they contribute exp(.) == 0 to the denominator.
    lane = lax.broadcasted_iota(jnp.int32, y.shape, 1)
    y = jnp.where(lane < n_real_classes, y, jnp.float32(-1e30))

    # LogSoftmax(dim=-1), max-subtracted (exp/log on the otherwise-idle EUP)
    m = jnp.max(y, axis=-1, keepdims=True)
    z = y - m
    lse = jnp.log(jnp.sum(jnp.exp(z), axis=-1, keepdims=True))
    out_ref[...] = z - lse


def pad_params(emb_table, w1, b1, w2, b2, *, lane=128):
    """One-time, parameter-load-time padding to lane-dense widths.

    Hoisted out of the forward hot path per perf review.
    """
    V, E = emb_table.shape
    H = w1.shape[1]
    C = w2.shape[1]
    VP, EP, HP, CP = (_round_up(d, lane) for d in (V, E, H, C))

    emb_p = jnp.zeros((VP, EP), jnp.float32).at[:V, :E].set(emb_table)
    w1_p = jnp.zeros((EP, HP), jnp.float32).at[:E, :H].set(w1)
    b1_p = jnp.zeros((1, HP), jnp.float32).at[:, :H].set(b1)
    w2_p = jnp.zeros((HP, CP), jnp.float32).at[:H, :C].set(w2)
    b2_p = jnp.zeros((1, CP), jnp.float32).at[:, :C].set(b2)
    return emb_p, w1_p, b1_p, w2_p, b2_p


@functools.partial(jax.jit, static_argnames=("n_classes",))
def ffnn_forward(token_ids, emb_p, w1_p, b1_p, w2_p, b2_p, *, n_classes):
    """token_ids: (B, L) int.  Params pre-padded via pad_params().

    Returns (L, n_classes) float32 log-probs (matches the PyTorch forward,
    including the Python-sum over the batch axis).
    """
    B, L = token_ids.shape
    VP, EP = emb_p.shape
    HP = w1_p.shape[1]
    CP = w2_p.shape[1]

    ids_lb = token_ids.astype(jnp.int32).T                  # (L, B), tiny

    grid_spec = pltpu.PrefetchScalarGridSpec(
        num_scalar_prefetch=0,
        grid=(1,),
        in_specs=[
            pl.BlockSpec((L, B), lambda i: (0, 0)),          # token ids
            pl.BlockSpec((VP, EP), lambda i: (0, 0)),        # embedding table
            pl.BlockSpec((EP, HP), lambda i: (0, 0)),        # W1 (padded)
            pl.BlockSpec((1, HP), lambda i: (0, 0)),         # b1
            pl.BlockSpec((HP, CP), lambda i: (0, 0)),        # W2 (padded)
            pl.BlockSpec((1, CP), lambda i: (0, 0)),         # b2
        ],
        out_specs=pl.BlockSpec((L, CP), lambda i: (0, 0)),
    )

    cost = pl.CostEstimate(
        flops=2 * L * (VP * EP + EP * HP + HP * CP) + B * L * VP,
        transcendentals=L * (CP + 1),
        bytes_accessed=4 * (L * B + VP * EP + EP * HP + HP + HP * CP + CP
                            + L * CP),
    )

    out_padded = pl.pallas_call(
        functools.partial(ffnn_kernel, n_classes),
        out_shape=jax.ShapeDtypeStruct((L, CP), jnp.float32),
        grid_spec=grid_spec,
        compiler_params=pltpu.CompilerParams(
            dimension_semantics=("arbitrary",)),
        cost_estimate=cost,
    )(ids_lb, emb_p, w1_p, b1_p, w2_p, b2_p)

    return out_padded[:, :n_classes]


if __name__ == "__main__":
    # Small, module-consistent shapes.
    VOCAB = 50        # pretrained_embeds rows
    EMB_DIM = 32      # embedding_dim
    HIDDEN = 64       # hidden_size (module constant)
    N_CLASSES = 4     # len(LABEL_INDICES)
    B, L = 2, 8       # batch, sequence length

    key = jax.random.PRNGKey(0)
    k_emb, k_w1, k_b1, k_w2, k_b2, k_x = jax.random.split(key, 6)

    emb_table = jax.random.normal(k_emb, (VOCAB, EMB_DIM), dtype=jnp.float32)
    w1 = jax.random.normal(k_w1, (EMB_DIM, HIDDEN), dtype=jnp.float32) * 0.1
    b1 = jax.random.normal(k_b1, (HIDDEN,), dtype=jnp.float32) * 0.1
    w2 = jax.random.normal(k_w2, (HIDDEN, N_CLASSES), dtype=jnp.float32) * 0.1
    b2 = jax.random.normal(k_b2, (N_CLASSES,), dtype=jnp.float32) * 0.1

    token_ids = jax.random.randint(k_x, (B, L), 0, VOCAB, dtype=jnp.int32)

    # Parameter padding happens ONCE here (parameter-load time), not per call.
    params = pad_params(emb_table, w1, b1, w2, b2)

    out = ffnn_forward(token_ids, *params, n_classes=N_CLASSES)
    out = jax.block_until_ready(out)

    # Pure-JAX reference (same semantics as the PyTorch forward).
    emb = jnp.take(emb_table, token_ids, axis=0)          # (B, L, E)
    x = jnp.sum(emb, axis=0)                              # sum(...) over batch
    h = jnp.maximum(x @ w1 + b1, 0.0)
    y = jnp.maximum(h @ w2 + b2, 0.0)
    ref = jax.nn.log_softmax(y, axis=-1)

    np.testing.assert_allclose(np.asarray(out), np.asarray(ref),
                               rtol=1e-5, atol=1e-5)
    assert out.shape == (L, N_CLASSES)
    print("KERNEL_OK")
</pallas_src>

<mosaic_0001>
module attributes {stable_mosaic.version = 11 : i64} {
  func.func @ffnn_kernel(%arg0: i32, %arg1: memref<8x2xi32, #tpu.memory_space<vmem>>, %arg2: memref<128x128xf32, #tpu.memory_space<vmem>>, %arg3: memref<128x128xf32, #tpu.memory_space<vmem>>, %arg4: memref<1x128xf32, #tpu.memory_space<vmem>>, %arg5: memref<128x128xf32, #tpu.memory_space<vmem>>, %arg6: memref<1x128xf32, #tpu.memory_space<vmem>>, %arg7: memref<8x128xf32, #tpu.memory_space<vmem>>) attributes {dimension_semantics = [#tpu.dimension_semantics<arbitrary>], iteration_bounds = array<i64: 1>, scalar_prefetch = 0 : i64, scratch_operands = 0 : i64, tpu.core_type = #tpu.core_type<tc>, window_params = [{pipeline_mode = #tpu.pipeline_mode<synchronous>, transform_indices = @transform_0, window_bounds = array<i64: 8, 2>}, {pipeline_mode = #tpu.pipeline_mode<synchronous>, transform_indices = @transform_1, window_bounds = array<i64: 128, 128>}, {pipeline_mode = #tpu.pipeline_mode<synchronous>, transform_indices = @transform_2, window_bounds = array<i64: 128, 128>}, {pipeline_mode = #tpu.pipeline_mode<synchronous>, transform_indices = @transform_3, window_bounds = array<i64: 1, 128>}, {pipeline_mode = #tpu.pipeline_mode<synchronous>, transform_indices = @transform_4, window_bounds = array<i64: 128, 128>}, {pipeline_mode = #tpu.pipeline_mode<synchronous>, transform_indices = @transform_5, window_bounds = array<i64: 1, 128>}, {pipeline_mode = #tpu.pipeline_mode<synchronous>, transform_indices = @transform_6, window_bounds = array<i64: 8, 128>}]} {
    %c0 = arith.constant 0 : index
    %c0_0 = arith.constant 0 : index
    %0 = vector.load %arg1[%c0, %c0_0] : memref<8x2xi32, #tpu.memory_space<vmem>>, vector<8x2xi32>
    %1 = tpu.iota {dimensions = array<i32: 1>} : vector<8x128xi32>
    %cst = arith.constant 0.000000e+00 : f32
    %2 = vector.broadcast %cst : f32 to vector<8x128xf32>
    %3 = vector.extract_strided_slice %0 {offsets = [0, 0], sizes = [8, 1], strides = [1, 1]} : vector<8x2xi32> to vector<8x1xi32>
    %4 = vector.broadcast %3 : vector<8x1xi32> to vector<8x128xi32>
    %5 = arith.cmpi eq, %1, %4 : vector<8x128xi32>
    %6 = arith.extui %5 : vector<8x128xi1> to vector<8x128xi32>
    %7 = arith.sitofp %6 : vector<8x128xi32> to vector<8x128xf32>
    %8 = arith.addf %2, %7 : vector<8x128xf32>
    %9 = vector.extract_strided_slice %0 {offsets = [0, 1], sizes = [8, 1], strides = [1, 1]} : vector<8x2xi32> to vector<8x1xi32>
    %10 = vector.broadcast %9 : vector<8x1xi32> to vector<8x128xi32>
    %11 = arith.cmpi eq, %1, %10 : vector<8x128xi32>
    %12 = arith.extui %11 : vector<8x128xi1> to vector<8x128xi32>
    %13 = arith.sitofp %12 : vector<8x128xi32> to vector<8x128xf32>
    %14 = arith.addf %8, %13 : vector<8x128xf32>
    %c0_1 = arith.constant 0 : index
    %c0_2 = arith.constant 0 : index
    %15 = vector.load %arg2[%c0_1, %c0_2] : memref<128x128xf32, #tpu.memory_space<vmem>>, vector<128x128xf32>
    %cst_3 = arith.constant dense<0.000000e+00> : vector<8x128xf32>
    %16 = tpu.matmul %14, %15, %cst_3 {dimension_numbers = #tpu.dot_dimension_numbers<[1], [0], [0], [1], [0, 0, 1, 1], [], []>} : vector<8x128xf32>, vector<128x128xf32>, vector<8x128xf32> -> vector<8x128xf32>
    %c0_4 = arith.constant 0 : index
    %c0_5 = arith.constant 0 : index
    %17 = vector.load %arg3[%c0_4, %c0_5] : memref<128x128xf32, #tpu.memory_space<vmem>>, vector<128x128xf32>
    %cst_6 = arith.constant dense<0.000000e+00> : vector<8x128xf32>
    %18 = tpu.matmul %16, %17, %cst_6 {dimension_numbers = #tpu.dot_dimension_numbers<[1], [0], [0], [1], [0, 0, 1, 1], [], []>} : vector<8x128xf32>, vector<128x128xf32>, vector<8x128xf32> -> vector<8x128xf32>
    %c0_7 = arith.constant 0 : index
    %c0_8 = arith.constant 0 : index
    %19 = vector.load %arg4[%c0_7, %c0_8] : memref<1x128xf32, #tpu.memory_space<vmem>>, vector<1x128xf32>
    %20 = vector.broadcast %19 : vector<1x128xf32> to vector<8x128xf32>
    %21 = arith.addf %18, %20 : vector<8x128xf32>
    %cst_9 = arith.constant 0.000000e+00 : f32
    %22 = vector.broadcast %cst_9 : f32 to vector<8x128xf32>
    %23 = arith.maximumf %21, %22 : vector<8x128xf32>
    %c0_10 = arith.constant 0 : index
    %c0_11 = arith.constant 0 : index
    %24 = vector.load %arg5[%c0_10, %c0_11] : memref<128x128xf32, #tpu.memory_space<vmem>>, vector<128x128xf32>
    %cst_12 = arith.constant dense<0.000000e+00> : vector<8x128xf32>
    %25 = tpu.matmul %23, %24, %cst_12 {dimension_numbers = #tpu.dot_dimension_numbers<[1], [0], [0], [1], [0, 0, 1, 1], [], []>} : vector<8x128xf32>, vector<128x128xf32>, vector<8x128xf32> -> vector<8x128xf32>
    %c0_13 = arith.constant 0 : index
    %c0_14 = arith.constant 0 : index
    %26 = vector.load %arg6[%c0_13, %c0_14] : memref<1x128xf32, #tpu.memory_space<vmem>>, vector<1x128xf32>
    %27 = vector.broadcast %26 : vector<1x128xf32> to vector<8x128xf32>
    %28 = arith.addf %25, %27 : vector<8x128xf32>
    %cst_15 = arith.constant 0.000000e+00 : f32
    %29 = vector.broadcast %cst_15 : f32 to vector<8x128xf32>
    %30 = arith.maximumf %28, %29 : vector<8x128xf32>
    %31 = tpu.iota {dimensions = array<i32: 1>} : vector<8x128xi32>
    %c4_i32 = arith.constant 4 : i32
    %32 = vector.broadcast %c4_i32 : i32 to vector<8x128xi32>
    %33 = arith.cmpi slt, %31, %32 : vector<8x128xi32>
    %cst_16 = arith.constant -1.000000e+30 : f32
    %34 = vector.broadcast %cst_16 : f32 to vector<8x128xf32>
    %35 = arith.select %33, %30, %34 : vector<8x128xi1>, vector<8x128xf32>
    %cst_17 = arith.constant dense<0xFF800000> : vector<8xf32>
    %36 = vector.multi_reduction <maximumf>, %35, %cst_17 [1] : vector<8x128xf32> to vector<8xf32>
    %37 = vector.shape_cast %36 : vector<8xf32> to vector<8x1xf32>
    %38 = vector.broadcast %37 : vector<8x1xf32> to vector<8x128xf32>
    %39 = arith.subf %35, %38 : vector<8x128xf32>
    %40 = math.exp %39 : vector<8x128xf32>
    %cst_18 = arith.constant dense<0.000000e+00> : vector<8xf32>
    %41 = vector.multi_reduction <add>, %40, %cst_18 [1] : vector<8x128xf32> to vector<8xf32>
    %42 = vector.shape_cast %41 : vector<8xf32> to vector<8x1xf32>
    %43 = math.log %42 : vector<8x1xf32>
    %44 = vector.broadcast %43 : vector<8x1xf32> to vector<8x128xf32>
    %45 = arith.subf %39, %44 : vector<8x128xf32>
    %c0_19 = arith.constant 0 : index
    %c0_20 = arith.constant 0 : index
    %46 = vector.load %arg7[%c0_19, %c0_20] : memref<8x128xf32, #tpu.memory_space<vmem>>, vector<8x128xf32>
    tpu.vector_store %arg7[%c0_19, %c0_20], %45 {strides = array<i32>} : memref<8x128xf32, #tpu.memory_space<vmem>>, vector<8x128xf32>,
    return
  }
  func.func @transform_0(%arg0: i32) -> (i32, i32) {
    %c0_i32 = arith.constant 0 : i32
    %c0_i32_0 = arith.constant 0 : i32
    %c0_i32_1 = arith.constant 0 : i32
    return %c0_i32, %c0_i32_0 : i32, i32
  }
  func.func @transform_1(%arg0: i32) -> (i32, i32) {
    %c0_i32 = arith.constant 0 : i32
    %c0_i32_0 = arith.constant 0 : i32
    %c0_i32_1 = arith.constant 0 : i32
    return %c0_i32, %c0_i32_0 : i32, i32
  }
  func.func @transform_2(%arg0: i32) -> (i32, i32) {
    %c0_i32 = arith.constant 0 : i32
    %c0_i32_0 = arith.constant 0 : i32
    %c0_i32_1 = arith.constant 0 : i32
    return %c0_i32, %c0_i32_0 : i32, i32
  }
  func.func @transform_3(%arg0: i32) -> (i32, i32) {
    %c0_i32 = arith.constant 0 : i32
    %c0_i32_0 = arith.constant 0 : i32
    %c0_i32_1 = arith.constant 0 : i32
    return %c0_i32, %c0_i32_0 : i32, i32
  }
  func.func @transform_4(%arg0: i32) -> (i32, i32) {
    %c0_i32 = arith.constant 0 : i32
    %c0_i32_0 = arith.constant 0 : i32
    %c0_i32_1 = arith.constant 0 : i32
    return %c0_i32, %c0_i32_0 : i32, i32
  }
  func.func @transform_5(%arg0: i32) -> (i32, i32) {
    %c0_i32 = arith.constant 0 : i32
    %c0_i32_0 = arith.constant 0 : i32
    %c0_i32_1 = arith.constant 0 : i32
    return %c0_i32, %c0_i32_0 : i32, i32
  }
  func.func @transform_6(%arg0: i32) -> (i32, i32) {
    %c0_i32 = arith.constant 0 : i32
    %c0_i32_0 = arith.constant 0 : i32
    %c0_i32_1 = arith.constant 0 : i32
    return %c0_i32, %c0_i32_0 : i32, i32
  }
}

</mosaic_0001>

<llo_original>
// kernel: ffnn_forward.1
$region0: #{ffnn_forward.1}
  #allocation0 [shape = 'u32[]', space=smem, size = 0x4, offset = 0x4, fixed_abs, tag = 'smem constant byte address 0x4 - core index']
  #allocation1 [shape = 'u32[144,128]{1,0:T(1,128)}', space=vmem, size = 0x12000, scoped, tag = 'internal scratch']
  %s0 = inlined_call_operand.vmem [shape: s32[8,2], index: 0, kind: input, shape index: {}]
  %s1 = inlined_call_operand.hbm [shape: f32[128,128], index: 1, kind: input, shape index: {}]
  %s2 = inlined_call_operand.hbm [shape: f32[128,128], index: 2, kind: input, shape index: {}]
  %s3 = inlined_call_operand.vmem [shape: f32[1,128], index: 3, kind: input, shape index: {}]
  %s4 = inlined_call_operand.hbm [shape: f32[128,128], index: 4, kind: input, shape index: {}]
  %s5 = inlined_call_operand.vmem [shape: f32[1,128], index: 5, kind: input, shape index: {}]
  %s6 = inlined_call_operand.vmem [shape: f32[8,128], index: 6, kind: output, shape index: {}]
  %s7 = sld [smem:[#allocation0]]
  $region46: #{ffnn_forward.1} parent=0
    _
  %s9 = ssub.s32 1, %s7
  %s10 = scalar_select 0, %s9, %s7
  $region1: #{ffnn_forward.1} parent=0
    #allocation2 [shape = 'u8[65536]{0}', space=vmem, size = 0x10000, scoped, tag = 'input window, operand 1, single buffered']
    #allocation3 [shape = 's32[1]{0}', space=sflag, size = 0x4, scoped, tag = 'scoped memory for ffnn_forward.1']
    #allocation4 [shape = 'u8[65536]{0}', space=vmem, size = 0x10000, scoped, tag = 'input window, operand 2, single buffered']
    #allocation5 [shape = 's32[1]{0}', space=sflag, size = 0x4, scoped, tag = 'scoped memory for ffnn_forward.1']
    #allocation6 [shape = 'u8[65536]{0}', space=vmem, size = 0x10000, scoped, tag = 'input window, operand 4, single buffered']
    %11 = vsyncpa [#allocation3], 0
    %12 = vsyncpa [#allocation5], 0
    // Predicated region
    $region2: #{ffnn_forward.1} parent=1 // pred_check
      _
    $region3: #{ffnn_forward.1} parent=1 // pred_check_branch
      %14 = sbr.rel (0) target = $region5
    $region4: #{ffnn_forward.1} parent=1 // pred_region
      _
    $region5: #{ffnn_forward.1} parent=1 // pred_fallthru
      _
    // Predicated region
    $region6: #{ffnn_forward.1} parent=1 // pred_check
      _
    $region7: #{ffnn_forward.1} parent=1 // pred_check_branch
      %16 = sbr.rel (0) target = $region9
    $region8: #{ffnn_forward.1} parent=1 // pred_region
      %s18 = ssub.s32 2048, 2048
      %19 = vsyncadd [#allocation3], %s18
      %s20 = sshll.u32 [#allocation2], 4
      %s21 = int_to_ptr.vmem [resolvable:$true] %s20
      %26 = dma.hbm_to_vmem [thread:$0]  %s1, 2048, %s21, [#allocation3], 128, 128, 8
    $region9: #{ffnn_forward.1} parent=1 // pred_fallthru
      _
    // Predicated region
    $region10: #{ffnn_forward.1} parent=1 // pred_check
      _
    $region11: #{ffnn_forward.1} parent=1 // pred_check_branch
      %28 = sbr.rel (0) target = $region13
    $region12: #{ffnn_forward.1} parent=1 // pred_region
      %s30 = ssub.s32 2048, 2048
      %31 = vsyncadd [#allocation5], %s30
      %s32 = sshll.u32 [#allocation4], 4
      %s33 = int_to_ptr.vmem [resolvable:$true] %s32
      %38 = dma.hbm_to_vmem [thread:$0]  %s2, 2048, %s33, [#allocation5], 128, 128, 8
    $region13: #{ffnn_forward.1} parent=1 // pred_fallthru
      _
    // Predicated region
    $region14: #{ffnn_forward.1} parent=1 // pred_check
      _
    $region15: #{ffnn_forward.1} parent=1 // pred_check_branch
      %40 = sbr.rel (0) target = $region17
    $region16: #{ffnn_forward.1} parent=1 // pred_region
      _
    $region17: #{ffnn_forward.1} parent=1 // pred_fallthru
      _
    // Predicated region
    $region18: #{ffnn_forward.1} parent=1 // pred_check
      _
    $region19: #{ffnn_forward.1} parent=1 // pred_check_branch
      %42 = sbr.rel (0) target = $region21
    $region20: #{ffnn_forward.1} parent=1 // pred_region
      %s44 = ssub.s32 2048, 2048
      %45 = vsyncadd [#allocation5], %s44
      %s46 = sshll.u32 [#allocation6], 4
      %s47 = int_to_ptr.vmem [resolvable:$true] %s46
      %52 = dma.hbm_to_vmem [thread:$0]  %s4, 2048, %s47, [#allocation5], 128, 128, 8
    $region21: #{ffnn_forward.1} parent=1 // pred_fallthru
      _
    // Predicated region
    $region22: #{ffnn_forward.1} parent=1 // pred_check
      _
    $region23: #{ffnn_forward.1} parent=1 // pred_check_branch
      %54 = sbr.rel (0) target = $region25
    $region24: #{ffnn_forward.1} parent=1 // pred_region
      _
    $region25: #{ffnn_forward.1} parent=1 // pred_fallthru
      _
    // Predicated region
    $region26: #{ffnn_forward.1} parent=1 // pred_check
      _
    $region27: #{ffnn_forward.1} parent=1 // pred_check_branch
      %56 = sbr.rel (0) target = $region29
    $region28: #{ffnn_forward.1} parent=1 // pred_region
      %57 = dma.done [#allocation3], 2048
    $region29: #{ffnn_forward.1} parent=1 // pred_fallthru
      _
    // Predicated region
    $region30: #{ffnn_forward.1} parent=1 // pred_check
      _
    $region31: #{ffnn_forward.1} parent=1 // pred_check_branch
      %59 = sbr.rel (0) target = $region33
    $region32: #{ffnn_forward.1} parent=1 // pred_region
      %60 = dma.done [#allocation5], 2048
    $region33: #{ffnn_forward.1} parent=1 // pred_fallthru
      _
    // Predicated region
    $region34: #{ffnn_forward.1} parent=1 // pred_check
      _
    $region35: #{ffnn_forward.1} parent=1 // pred_check_branch
      %62 = sbr.rel (0) target = $region37
    $region36: #{ffnn_forward.1} parent=1 // pred_region
      %63 = dma.done [#allocation5], 2048
    $region37: #{ffnn_forward.1} parent=1 // pred_fallthru
      _
    %v64 = vld [vmem:[%s0] sm:$0xff]
    %v65 = vlaneseq
    %v66 = vand.u32 %v65, 127
    %67 = vset.pattern.permute.xlu0 0
    %68 = vperm.xlu0 %67, %v64
    %v69 = vpop.permute.xlu0 %68
    %vm70 = vcmp.eq.s32.totalorder %v66, %v69
    %v71 = vsel %vm70, 1, 0
    %v72 = vcvt.s32.f32 %v71
    %v73 = vadd.f32 %v72, 0.0
    %74 = vset.pattern.permute.xlu0 1
    %75 = vperm.xlu0 %74, %v64
    %v76 = vpop.permute.xlu0 %75
    %vm77 = vcmp.eq.s32.totalorder %v66, %v76
    %v78 = vsel %vm77, 1, 0
    %v79 = vcvt.s32.f32 %v78
    %v80 = vadd.f32 %v73, %v79
    %v81 = vld [vmem:[#allocation2] sm:$0xff]
    %v82 = vld [vmem:[#allocation2 + $0x8] sm:$0xff]
    %v83 = vld [vmem:[#allocation2 + $0x10] sm:$0xff]
    %v84 = vld [vmem:[#allocation2 + $0x18] sm:$0xff]
    %v85 = vld [vmem:[#allocation2 + $0x20] sm:$0xff]
    %v86 = vld [vmem:[#allocation2 + $0x28] sm:$0xff]
    %v87 = vld [vmem:[#allocation2 + $0x30] sm:$0xff]
    %v88 = vld [vmem:[#allocation2 + $0x38] sm:$0xff]
    %v89 = vld [vmem:[#allocation2 + $0x40] sm:$0xff]
    %v90 = vld [vmem:[#allocation2 + $0x48] sm:$0xff]
    %v91 = vld [vmem:[#allocation2 + $0x50] sm:$0xff]
    %v92 = vld [vmem:[#allocation2 + $0x58] sm:$0xff]
    %v93 = vld [vmem:[#allocation2 + $0x60] sm:$0xff]
    %v94 = vld [vmem:[#allocation2 + $0x68] sm:$0xff]
    %v95 = vld [vmem:[#allocation2 + $0x70] sm:$0xff]
    %v96 = vld [vmem:[#allocation2 + $0x78] sm:$0xff]
    %97 = vmatprep.subr.mxu0 0.0
    %98 = vmatpush1.msra.mxu0 %v96
    %99 = vmatprep.subr.mxu0 0.0
    %100 = vmatpush1.msra.mxu0 %v95
    %101 = vmatprep.subr.mxu0 0.0
    %102 = vmatpush1.msra.mxu0 %v94
    %103 = vmatprep.subr.mxu0 0.0
    %104 = vmatpush1.msra.mxu0 %v93
    %105 = vmatprep.subr.mxu0 0.0
    %106 = vmatpush1.msra.mxu0 %v92
    %107 = vmatprep.subr.mxu0 0.0
    %108 = vmatpush1.msra.mxu0 %v91
    %109 = vmatprep.subr.mxu0 0.0
    %110 = vmatpush1.msra.mxu0 %v90
    %111 = vmatprep.subr.mxu0 0.0
    %112 = vmatpush1.msra.mxu0 %v89
    %113 = vmatprep.subr.mxu0 0.0
    %114 = vmatpush1.msra.mxu0 %v88
    %115 = vmatprep.subr.mxu0 0.0
    %116 = vmatpush1.msra.mxu0 %v87
    %117 = vmatprep.subr.mxu0 0.0
    %118 = vmatpush1.msra.mxu0 %v86
    %119 = vmatprep.subr.mxu0 0.0
    %120 = vmatpush1.msra.mxu0 %v85
    %121 = vmatprep.subr.mxu0 0.0
    %122 = vmatpush1.msra.mxu0 %v84
    %123 = vmatprep.subr.mxu0 0.0
    %124 = vmatpush1.msra.mxu0 %v83
    %125 = vmatprep.subr.mxu0 0.0
    %126 = vmatpush1.msra.mxu0 %v82
    %127 = vmatprep.subr.mxu0 0.0
    %128 = vmatpush1.msra.mxu0 %v81
    %129 = vmatprep.subr.mxu0 0.0
    %130 = vmatpush2.msra.mxu0 0.0
    %131 = vmatprep.subr.mxu0 0.0
    %132 = vmatpush2.msra.mxu0 0.0
    %133 = vmatprep.subr.mxu0 0.0
    %134 = vmatpush2.msra.mxu0 0.0
    %135 = vmatprep.subr.mxu0 0.0
    %136 = vmatpush2.msra.mxu0 0.0
    %137 = vmatprep.subr.mxu0 0.0
    %138 = vmatpush2.msra.mxu0 0.0
    %139 = vmatprep.subr.mxu0 0.0
    %140 = vmatpush2.msra.mxu0 0.0
    %141 = vmatprep.subr.mxu0 0.0
    %142 = vmatpush2.msra.mxu0 0.0
    %143 = vmatprep.subr.mxu0 0.0
    %144 = vmatpush2.msra.mxu0 0.0
    %145 = vmatprep.subr.mxu0 0.0
    %146 = vmatpush2.msra.mxu0 0.0
    %147 = vmatprep.subr.mxu0 0.0
    %148 = vmatpush2.msra.mxu0 0.0
    %149 = vmatprep.subr.mxu0 0.0
    %150 = vmatpush2.msra.mxu0 0.0
    %151 = vmatprep.subr.mxu0 0.0
    %152 = vmatpush2.msra.mxu0 0.0
    %153 = vmatprep.subr.mxu0 0.0
    %154 = vmatpush2.msra.mxu0 0.0
    %155 = vmatprep.subr.mxu0 0.0
    %156 = vmatpush2.msra.mxu0 0.0
    %157 = vmatprep.subr.mxu0 0.0
    %158 = vmatpush2.msra.mxu0 0.0
    %159 = vmatprep.subr.mxu0 0.0
    %160 = vmatpush2.msra.mxu0 0.0
    %161 = vmatprep.mubr.f32.mxu0 0.0
    %162 = vmatmul.mubr.f32.gmra.mxu0 %v80
    %v163 = vpop.f32.mrf.mxu0
    %v164 = vadd.f32 0.0, %v163
    %v165 = vpop.f32.mrf.mxu0
    %166 = vdwg.mxu0
    %v167 = vld [vmem:[#allocation4] sm:$0xff]
    %v168 = vld [vmem:[#allocation4 + $0x8] sm:$0xff]
    %v169 = vld [vmem:[#allocation4 + $0x10] sm:$0xff]
    %v170 = vld [vmem:[#allocation4 + $0x18] sm:$0xff]
    %v171 = vld [vmem:[#allocation4 + $0x20] sm:$0xff]
    %v172 = vld [vmem:[#allocation4 + $0x28] sm:$0xff]
    %v173 = vld [vmem:[#allocation4 + $0x30] sm:$0xff]
    %v174 = vld [vmem:[#allocation4 + $0x38] sm:$0xff]
    %v175 = vld [vmem:[#allocation4 + $0x40] sm:$0xff]
    %v176 = vld [vmem:[#allocation4 + $0x48] sm:$0xff]
    %v177 = vld [vmem:[#allocation4 + $0x50] sm:$0xff]
    %v178 = vld [vmem:[#allocation4 + $0x58] sm:$0xff]
    %v179 = vld [vmem:[#allocation4 + $0x60] sm:$0xff]
    %v180 = vld [vmem:[#allocation4 + $0x68] sm:$0xff]
    %v181 = vld [vmem:[#allocation4 + $0x70] sm:$0xff]
    %v182 = vld [vmem:[#allocation4 + $0x78] sm:$0xff]
    %v183 = vld [vmem:[%s3] sm:$0x1]
    %v185 = vlaneseq
    %v186 = vshrl.u32 %v185, 7
    %v187 = vsub.s32 0, %v186
    %v188 = vrot.slane %v183, %v187
    %190 = vmatprep.subr.mxu0 0.0
    %191 = vmatpush1.msra.mxu0 %v182
    %192 = vmatprep.subr.mxu0 0.0
    %193 = vmatpush1.msra.mxu0 %v181
    %194 = vmatprep.subr.mxu0 0.0
    %195 = vmatpush1.msra.mxu0 %v180
    %196 = vmatprep.subr.mxu0 0.0
    %197 = vmatpush1.msra.mxu0 %v179
    %198 = vmatprep.subr.mxu0 0.0
    %199 = vmatpush1.msra.mxu0 %v178
    %200 = vmatprep.subr.mxu0 0.0
    %201 = vmatpush1.msra.mxu0 %v177
    %202 = vmatprep.subr.mxu0 0.0
    %203 = vmatpush1.msra.mxu0 %v176
    %204 = vmatprep.subr.mxu0 0.0
    %205 = vmatpush1.msra.mxu0 %v175
    %206 = vmatprep.subr.mxu0 0.0
    %207 = vmatpush1.msra.mxu0 %v174
    %208 = vmatprep.subr.mxu0 0.0
    %209 = vmatpush1.msra.mxu0 %v173
    %210 = vmatprep.subr.mxu0 0.0
    %211 = vmatpush1.msra.mxu0 %v172
    %212 = vmatprep.subr.mxu0 0.0
    %213 = vmatpush1.msra.mxu0 %v171
    %214 = vmatprep.subr.mxu0 0.0
    %215 = vmatpush1.msra.mxu0 %v170
    %216 = vmatprep.subr.mxu0 0.0
    %217 = vmatpush1.msra.mxu0 %v169
    %218 = vmatprep.subr.mxu0 0.0
    %219 = vmatpush1.msra.mxu0 %v168
    %220 = vmatprep.subr.mxu0 0.0
    %221 = vmatpush1.msra.mxu0 %v167
    %222 = vmatprep.subr.mxu0 0.0
    %223 = vmatpush2.msra.mxu0 0.0
    %224 = vmatprep.subr.mxu0 0.0
    %225 = vmatpush2.msra.mxu0 0.0
    %226 = vmatprep.subr.mxu0 0.0
    %227 = vmatpush2.msra.mxu0 0.0
    %228 = vmatprep.subr.mxu0 0.0
    %229 = vmatpush2.msra.mxu0 0.0
    %230 = vmatprep.subr.mxu0 0.0
    %231 = vmatpush2.msra.mxu0 0.0
    %232 = vmatprep.subr.mxu0 0.0
    %233 = vmatpush2.msra.mxu0 0.0
    %234 = vmatprep.subr.mxu0 0.0
    %235 = vmatpush2.msra.mxu0 0.0
    %236 = vmatprep.subr.mxu0 0.0
    %237 = vmatpush2.msra.mxu0 0.0
    %238 = vmatprep.subr.mxu0 0.0
    %239 = vmatpush2.msra.mxu0 0.0
    %240 = vmatprep.subr.mxu0 0.0
    %241 = vmatpush2.msra.mxu0 0.0
    %242 = vmatprep.subr.mxu0 0.0
    %243 = vmatpush2.msra.mxu0 0.0
    %244 = vmatprep.subr.mxu0 0.0
    %245 = vmatpush2.msra.mxu0 0.0
    %246 = vmatprep.subr.mxu0 0.0
    %247 = vmatpush2.msra.mxu0 0.0
    %248 = vmatprep.subr.mxu0 0.0
    %249 = vmatpush2.msra.mxu0 0.0
    %250 = vmatprep.subr.mxu0 0.0
    %251 = vmatpush2.msra.mxu0 0.0
    %252 = vmatprep.subr.mxu0 0.0
    %253 = vmatpush2.msra.mxu0 0.0
    %254 = vmatprep.mubr.f32.mxu0 0.0
    %255 = vmatmul.mubr.f32.gmra.mxu0 %v164
    %v256 = vpop.f32.mrf.mxu0
    %v257 = vadd.f32 %v188, %v256
    %v258 = vpop.f32.mrf.mxu0
    %259 = vdwg.mxu0
    %v260 = vmax.f32 %v257, 0.0
    %v261 = vld [vmem:[#allocation6] sm:$0xff]
    %v262 = vld [vmem:[#allocation6 + $0x8] sm:$0xff]
    %v263 = vld [vmem:[#allocation6 + $0x10] sm:$0xff]
    %v264 = vld [vmem:[#allocation6 + $0x18] sm:$0xff]
    %v265 = vld [vmem:[#allocation6 + $0x20] sm:$0xff]
    %v266 = vld [vmem:[#allocation6 + $0x28] sm:$0xff]
    %v267 = vld [vmem:[#allocation6 + $0x30] sm:$0xff]
    %v268 = vld [vmem:[#allocation6 + $0x38] sm:$0xff]
    %v269 = vld [vmem:[#allocation6 + $0x40] sm:$0xff]
    %v270 = vld [vmem:[#allocation6 + $0x48] sm:$0xff]
    %v271 = vld [vmem:[#allocation6 + $0x50] sm:$0xff]
    %v272 = vld [vmem:[#allocation6 + $0x58] sm:$0xff]
    %v273 = vld [vmem:[#allocation6 + $0x60] sm:$0xff]
    %v274 = vld [vmem:[#allocation6 + $0x68] sm:$0xff]
    %v275 = vld [vmem:[#allocation6 + $0x70] sm:$0xff]
    %v276 = vld [vmem:[#allocation6 + $0x78] sm:$0xff]
    %v277 = vld [vmem:[%s5] sm:$0x1]
    %v279 = vlaneseq
    %v280 = vshrl.u32 %v279, 7
    %v281 = vsub.s32 0, %v280
    %v282 = vrot.slane %v277, %v281
    %284 = vmatprep.subr.mxu0 0.0
    %285 = vmatpush1.msra.mxu0 %v276
    %286 = vmatprep.subr.mxu0 0.0
    %287 = vmatpush1.msra.mxu0 %v275
    %288 = vmatprep.subr.mxu0 0.0
    %289 = vmatpush1.msra.mxu0 %v274
    %290 = vmatprep.subr.mxu0 0.0
    %291 = vmatpush1.msra.mxu0 %v273
    %292 = vmatprep.subr.mxu0 0.0
    %293 = vmatpush1.msra.mxu0 %v272
    %294 = vmatprep.subr.mxu0 0.0
    %295 = vmatpush1.msra.mxu0 %v271
    %296 = vmatprep.subr.mxu0 0.0
    %297 = vmatpush1.msra.mxu0 %v270
    %298 = vmatprep.subr.mxu0 0.0
    %299 = vmatpush1.msra.mxu0 %v269
    %300 = vmatprep.subr.mxu0 0.0
    %301 = vmatpush1.msra.mxu0 %v268
    %302 = vmatprep.subr.mxu0 0.0
    %303 = vmatpush1.msra.mxu0 %v267
    %304 = vmatprep.subr.mxu0 0.0
    %305 = vmatpush1.msra.mxu0 %v266
    %306 = vmatprep.subr.mxu0 0.0
    %307 = vmatpush1.msra.mxu0 %v265
    %308 = vmatprep.subr.mxu0 0.0
    %309 = vmatpush1.msra.mxu0 %v264
    %310 = vmatprep.subr.mxu0 0.0
    %311 = vmatpush1.msra.mxu0 %v263
    %312 = vmatprep.subr.mxu0 0.0
    %313 = vmatpush1.msra.mxu0 %v262
    %314 = vmatprep.subr.mxu0 0.0
    %315 = vmatpush1.msra.mxu0 %v261
    %316 = vmatprep.subr.mxu0 0.0
    %317 = vmatpush2.msra.mxu0 0.0
    %318 = vmatprep.subr.mxu0 0.0
    %319 = vmatpush2.msra.mxu0 0.0
    %320 = vmatprep.subr.mxu0 0.0
    %321 = vmatpush2.msra.mxu0 0.0
    %322 = vmatprep.subr.mxu0 0.0
    %323 = vmatpush2.msra.mxu0 0.0
    %324 = vmatprep.subr.mxu0 0.0
    %325 = vmatpush2.msra.mxu0 0.0
    %326 = vmatprep.subr.mxu0 0.0
    %327 = vmatpush2.msra.mxu0 0.0
    %328 = vmatprep.subr.mxu0 0.0
    %329 = vmatpush2.msra.mxu0 0.0
    %330 = vmatprep.subr.mxu0 0.0
    %331 = vmatpush2.msra.mxu0 0.0
    %332 = vmatprep.subr.mxu0 0.0
    %333 = vmatpush2.msra.mxu0 0.0
    %334 = vmatprep.subr.mxu0 0.0
    %335 = vmatpush2.msra.mxu0 0.0
    %336 = vmatprep.subr.mxu0 0.0
    %337 = vmatpush2.msra.mxu0 0.0
    %338 = vmatprep.subr.mxu0 0.0
    %339 = vmatpush2.msra.mxu0 0.0
    %340 = vmatprep.subr.mxu0 0.0
    %341 = vmatpush2.msra.mxu0 0.0
    %342 = vmatprep.subr.mxu0 0.0
    %343 = vmatpush2.msra.mxu0 0.0
    %344 = vmatprep.subr.mxu0 0.0
    %345 = vmatpush2.msra.mxu0 0.0
    %346 = vmatprep.subr.mxu0 0.0
    %347 = vmatpush2.msra.mxu0 0.0
    %348 = vmatprep.mubr.f32.mxu0 0.0
    %349 = vmatmul.mubr.f32.gmra.mxu0 %v260
    %v350 = vpop.f32.mrf.mxu0
    %v351 = vadd.f32 %v282, %v350
    %v352 = vpop.f32.mrf.mxu0
    %353 = vdwg.mxu0
    %v354 = vmax.f32 %v351, 0.0
    %vm355 = vcmp.lt.s32.totalorder %v66, 4
    %v356 = vsel %vm355, %v354, -1e+30
    %357 = vmax.xlane.f32.xlu0 %v356
    %v358 = vpop.xlane.xlu0 %357
    %v359 = vsub.f32 %v356, %v358
    %v360 = vmul.f32 %v359, 1.442695
    %v361 = vpow.pop %v360
    %362 = vadd.xlane.f32.xlu0 %v361
    %v363 = vpop.xlane.xlu0 %362
    %v364 = vlog2.pop %v363
    %v365 = vmul.f32 %v364, 0.6931472
    %v366 = vsub.f32 %v359, %v365
    %367 = vst [vmem:[%s6] sm:$0xff] %v366
    // Predicated region
    $region38: #{ffnn_forward.1} parent=1 // pred_check
      _
    $region39: #{ffnn_forward.1} parent=1 // pred_check_branch
      %369 = sbr.rel (0) target = $region41
    $region40: #{ffnn_forward.1} parent=1 // pred_region
      _
    $region41: #{ffnn_forward.1} parent=1 // pred_fallthru
      _
    // Predicated region
    $region42: #{ffnn_forward.1} parent=1 // pred_check
      _
    $region43: #{ffnn_forward.1} parent=1 // pred_check_branch
      %371 = sbr.rel (0) target = $region45
    $region44: #{ffnn_forward.1} parent=1 // pred_region
      _
    $region45: #{ffnn_forward.1} parent=1 // pred_fallthru
      _
    %372 = vsyncpa [#allocation3], 1
    %373 = vsyncpa [#allocation5], 1

</llo_original>
